<compile_context>
chip_gen: v6e
topology: v6e:2x2x1
jax: 0.10.0
libtpu: 0.0.40
codegen_flags: <defaults>
</compile_context>

<pallas_src>
import jax
import jax.numpy as jnp
from jax.experimental import pallas as pl
from jax.experimental.pallas import tpu as pltpu


def _relpos_kernel(q_ref, rel_ref, o_ref):
    """q_ref: (TN, D); rel_ref: (D, TM); o_ref: (TN, TM)."""
    o_ref[...] = jnp.dot(
        q_ref[...], rel_ref[...], preferred_element_type=jnp.float32
    ).astype(o_ref.dtype)


def _vmem_budget_and_limit():
    """Return (tile budget bytes, vmem_limit_bytes) tuned per TPU generation."""
    cap = None
    try:
        cap = getattr(pltpu.get_tpu_info(), "vmem_capacity_bytes", None)
    except Exception:
        cap = None
    if cap is not None and cap >= 128 * 1024 * 1024:          # v5e / v6e: 128 MiB VMEM
        return 80 * 1024 * 1024, 100 * 1024 * 1024
    return 22 * 1024 * 1024, 32 * 1024 * 1024                 # v7x-safe default


def _pick_tiles(N, M, D, in_bytes, out_bytes, budget):
    """Row/column tile sizes for the (N, D) x (D, M) matmul under a VMEM budget."""
    row_floor = 16 if in_bytes < 4 else 8      # bf16/int8 min sublane tile is taller

    def need(tn, tm):
        return (2 * tn * D * in_bytes          # q block, double-buffered
                + 2 * D * tm * in_bytes        # rel block, double-buffered
                + 2 * tn * tm * out_bytes      # out block, double-buffered
                + tn * tm * 4)                 # f32 MXU accumulator tile

    # Column tile: keep the full width when the row tile can still reach 512;
    # otherwise switch to lane-aligned (multiple-of-128) column chunks (long L).
    tm = M
    if M > 128 and need(512, M) > budget:
        tm = 2048
        while tm > 128 and need(512, tm) > budget:
            tm //= 2
        tm = min(tm, M)

    # Row tile: largest MXU-friendly size that fits, but keep >= 2 grid steps so
    # both v7x TensorCores get work when the column axis is a single block.
    single_col = pl.cdiv(M, tm) == 1
    half_rows = max(row_floor, pl.cdiv(pl.cdiv(N, 2), row_floor) * row_floor)
    tn = min(N, row_floor)
    for cand in (2048, 1024, 512, 256, 128, 64, 32, 16, 8):
        if cand < row_floor or cand > N:
            continue
        if single_col and N > row_floor and cand > half_rows:
            continue                            # would leave a one-step grid
        if need(cand, tm) <= budget:
            tn = cand
            break
    return tn, tm


def relative_position_embedding(q, k, embedding_table):
    """Pallas equivalent of RelativePositionEmbedding.forward.

    q, k: (B, H, L, D).  k is unused (the PyTorch forward only reads seq_length
    from q).  embedding_table: (2*max_position_embeddings - 1, hidden_size).
    Returns (B, H, L, 2L-1) in q's dtype.
    """
    del k  # unused, kept for signature fidelity with the PyTorch module
    B, H, L, D = q.shape
    V, hidden = embedding_table.shape
    assert hidden == D, "hidden_size must equal dim_per_head for the einsum"
    assert V >= 2 * L - 1, "embedding table smaller than the relative-position window"

    M = 2 * L - 1
    N = B * H * L
    out_dtype = q.dtype
    in_bytes = jnp.dtype(q.dtype).itemsize
    out_bytes = jnp.dtype(out_dtype).itemsize

    # Gather the (M, D) relative-embedding rows once outside the kernel and
    # pre-transpose to (D, M) so the kernel's rhs contracts on dim 0 (no per-step
    # XLU re-layout of the resident matrix).
    # TODO(synk): confirm the negative-index (wrap-around) convention matches the
    #             deployed PyTorch embedding behavior (vs. an explicit
    #             `+ max_position_embeddings - 1` offset).
    positions = jnp.arange(-L + 1, L) % V          # wrap-around for negative offsets
    rel_t = embedding_table[positions].astype(q.dtype).T    # (D, M)

    q2d = q.reshape(N, D)

    budget, vmem_limit = _vmem_budget_and_limit()
    TN, TM = _pick_tiles(N, M, D, in_bytes, out_bytes, budget)
    n_rows, n_cols = pl.cdiv(N, TN), pl.cdiv(M, TM)

    cost = pl.CostEstimate(
        flops=2 * N * M * D,
        transcendentals=0,
        bytes_accessed=(N * D * in_bytes                  # q (read once)
                        + n_rows * M * D * in_bytes       # rel re-read per row block
                        + N * M * out_bytes),             # output write
    )

    out = pl.pallas_call(
        _relpos_kernel,
        out_shape=jax.ShapeDtypeStruct((N, M), out_dtype),
        grid=(n_rows, n_cols),
        in_specs=[
            # q row tile: constant over the inner (column) axis -> resident across
            # the column sweep.
            pl.BlockSpec((TN, D), lambda i, j: (i, 0)),
            # pre-transposed rel column tile (single full-width block for usual M).
            pl.BlockSpec((D, TM), lambda i, j: (0, j)),
        ],
        out_specs=pl.BlockSpec((TN, TM), lambda i, j: (i, j)),
        compiler_params=pltpu.CompilerParams(
            dimension_semantics=("parallel", "parallel"),   # fully independent grid
            vmem_limit_bytes=vmem_limit,
        ),
        cost_estimate=cost,
    )(q2d, rel_t)

    return out.reshape(B, H, L, M)


def _reference(q, embedding_table):
    """Pure-JAX reference with the same wrap-around indexing."""
    B, H, L, D = q.shape
    V = embedding_table.shape[0]
    positions = jnp.arange(-L + 1, L) % V
    rel = embedding_table[positions]                      # (2L-1, D)
    return jnp.einsum(
        "bhld,md->bhlm", q.astype(jnp.float32), rel.astype(jnp.float32)
    )


if __name__ == "__main__":
    # Small shapes consistent with the module's forward.
    B, H, L, D = 2, 4, 8, 32
    max_position_embeddings = L + 1            # docstring: max_pos = seq_length + 1
    hidden_size = D
    V = 2 * max_position_embeddings - 1        # embedding vocabulary size

    key = jax.random.PRNGKey(0)
    kq, kk, ke = jax.random.split(key, 3)
    q = jax.random.normal(kq, (B, H, L, D), dtype=jnp.float32)
    k = jax.random.normal(kk, (B, H, L, D), dtype=jnp.float32)
    embedding_table = jax.random.normal(ke, (V, hidden_size), dtype=jnp.float32)

    out = relative_position_embedding(q, k, embedding_table)
    out = jax.block_until_ready(out)

    ref = _reference(q, embedding_table)
    assert out.shape == (B, H, L, 2 * L - 1)
    assert jnp.allclose(out.astype(jnp.float32), ref, atol=1e-4, rtol=1e-4)

    print("KERNEL_OK")
</pallas_src>

<mosaic_0001>
module attributes {stable_mosaic.version = 11 : i64} {
  func.func @_relpos_kernel(%arg0: i32, %arg1: i32, %arg2: memref<32x32xf32, #tpu.memory_space<vmem>>, %arg3: memref<32x15xf32, #tpu.memory_space<vmem>>, %arg4: memref<32x15xf32, #tpu.memory_space<vmem>>) attributes {dimension_semantics = [#tpu.dimension_semantics<parallel>, #tpu.dimension_semantics<parallel>], iteration_bounds = array<i64: 2, 1>, scalar_prefetch = 0 : i64, scratch_operands = 0 : i64, tpu.core_type = #tpu.core_type<tc>, window_params = [{transform_indices = @transform_0, window_bounds = array<i64: 32, 32>}, {transform_indices = @transform_1, window_bounds = array<i64: 32, 15>}, {transform_indices = @transform_2, window_bounds = array<i64: 32, 15>}]} {
    %c0 = arith.constant 0 : index
    %c0_0 = arith.constant 0 : index
    %0 = vector.load %arg2[%c0, %c0_0] : memref<32x32xf32, #tpu.memory_space<vmem>>, vector<32x32xf32>
    %c0_1 = arith.constant 0 : index
    %c0_2 = arith.constant 0 : index
    %1 = vector.load %arg3[%c0_1, %c0_2] : memref<32x15xf32, #tpu.memory_space<vmem>>, vector<32x15xf32>
    %cst = arith.constant dense<0.000000e+00> : vector<32x15xf32>
    %2 = tpu.matmul %0, %1, %cst {dimension_numbers = #tpu.dot_dimension_numbers<[1], [0], [0], [1], [0, 0, 1, 1], [], []>} : vector<32x32xf32>, vector<32x15xf32>, vector<32x15xf32> -> vector<32x15xf32>
    %c0_3 = arith.constant 0 : index
    %c0_4 = arith.constant 0 : index
    %3 = vector.load %arg4[%c0_3, %c0_4] : memref<32x15xf32, #tpu.memory_space<vmem>>, vector<32x15xf32>
    tpu.vector_store %arg4[%c0_3, %c0_4], %2 {strides = array<i32>} : memref<32x15xf32, #tpu.memory_space<vmem>>, vector<32x15xf32>,
    return
  }
  func.func @transform_0(%arg0: i32, %arg1: i32) -> (i32, i32) {
    %c0_i32 = arith.constant 0 : i32
    %c0_i32_0 = arith.constant 0 : i32
    return %arg0, %c0_i32 : i32, i32
  }
  func.func @transform_1(%arg0: i32, %arg1: i32) -> (i32, i32) {
    %c0_i32 = arith.constant 0 : i32
    %c0_i32_0 = arith.constant 0 : i32
    return %c0_i32, %arg1 : i32, i32
  }
  func.func @transform_2(%arg0: i32, %arg1: i32) -> (i32, i32) {
    %c0_i32 = arith.constant 0 : i32
    return %arg0, %arg1 : i32, i32
  }
}

</mosaic_0001>

<llo_original>
// kernel: tpu_custom_call.1
$region0: #{tpu_custom_call.1}
  #allocation0 [shape = 'u32[]', space=smem, size = 0x4, offset = 0x4, fixed_abs, tag = 'smem constant byte address 0x4 - core index']
  #allocation1 [shape = 'u32[144,128]{1,0:T(1,128)}', space=vmem, size = 0x12000, scoped, tag = 'internal scratch']
  %s0 = inlined_call_operand.vmem [shape: f32[64,32], index: 0, kind: input, shape index: {}]
  %s1 = inlined_call_operand.vmem [shape: f32[32,15], index: 1, kind: input, shape index: {}]
  %s2 = inlined_call_operand.vmem [shape: f32[64,15], index: 2, kind: output, shape index: {}]
  %s3 = sld [smem:[#allocation0]]
  $region41: #{tpu_custom_call.1} parent=0
    _
  %s5 = ssub.s32 1, %s3
  %s6 = scalar_select 0, %s5, %s3
  loop: start=0, step=1, limit=4
  $region2: #{tpu_custom_call.1} parent=0 // loop_pre_header
    _
  $region3: #{tpu_custom_call.1} parent=0 // loop_header
    %s8 = sphi 0, %s12
    %p9 = scmp.ge.s32.totalorder %s8, 4
    %s15 = sphi 0, %s27
    %s16 = sphi 0, %s23
    %s17 = sphi 0, %s15
    %s18 = sphi 0, %s16
    %s19 = sphi 0, %s17
    %s20 = sphi 0, %s18
    %s30 = sphi 0, %s32
    %s33 = sphi 0, %s30
    %s34 = sphi 0, %s33
    %s50 = sphi 0, %s34
    %s56 = sphi 0, %s58
    %s59 = sphi 0, %s56
    %s60 = sphi 0, %s59
    %s76 = sphi 0, %s60
    %s84 = sphi 0, %s86
    %s87 = sphi 0, %s84
    %s88 = sphi 0, %s87
    %s104 = sphi 0, %s88
  $region4: #{tpu_custom_call.1} parent=0 // loop_header_branch
    %11 = sbr.rel (%p9) target = $region8
  $region5: #{tpu_custom_call.1} parent=0 // loop_body
    %s13 = ssub.s32 %s8, 1
    %s14 = ssub.s32 %s8, 2
    %s21 = sadd.s32 1, %s16
    %p22 = scmp.ge.s32.totalorder %s21, 1
    %s23 = scalar_select %p22, 0, %s21
    %s24 = sadd.s32 1, %s15
    %s25 = scalar_select %p22, %s24, %s15
    %p26 = scmp.ge.s32.totalorder %s25, 2
    %s27 = scalar_select %p26, 0, %s25
    %s28 = ssub.s32 %s15, %s27
    %p29 = scmp.eq.s32.totalorder %s28, 0
    %s31 = sadd.s32 %s30, 1
    %s32 = scalar_select %p29, %s30, %s31
    %p35 = pneg %p29
    %p36 = scmp.eq.s32.totalorder %s8, 1
    %p37 = por %p35, %p36
    %p38 = scmp.ne.s32.totalorder %s30, %s33
    %p39 = scmp.eq.s32.totalorder %s8, 0
    %p40 = por %p38, %p39
    %p41 = scmp.ne.s32.totalorder %s30, %s33
    %p42 = scmp.eq.s32.totalorder %s13, 1
    %p43 = por %p41, %p42
    %p44 = scmp.ne.s32.totalorder %s33, %s34
    %p45 = scmp.eq.s32.totalorder %s13, 0
    %p46 = por %p44, %p45
    %p47 = scmp.ne.s32.totalorder %s33, %s34
    %p48 = scmp.eq.s32.totalorder %s14, 1
    %p49 = por %p47, %p48
    %p51 = scmp.ne.s32.totalorder %s34, %s50
    %p52 = scmp.eq.s32.totalorder %s14, 0
    %p53 = por %p51, %p52
    %s54 = ssub.s32 %s16, %s23
    %p55 = scmp.eq.s32.totalorder %s54, 0
    %s57 = sadd.s32 %s56, 1
    %s58 = scalar_select %p55, %s56, %s57
    %p61 = pneg %p55
    %p62 = scmp.eq.s32.totalorder %s8, 1
    %p63 = por %p61, %p62
    %p64 = scmp.ne.s32.totalorder %s56, %s59
    %p65 = scmp.eq.s32.totalorder %s8, 0
    %p66 = por %p64, %p65
    %p67 = scmp.ne.s32.totalorder %s56, %s59
    %p68 = scmp.eq.s32.totalorder %s13, 1
    %p69 = por %p67, %p68
    %p70 = scmp.ne.s32.totalorder %s59, %s60
    %p71 = scmp.eq.s32.totalorder %s13, 0
    %p72 = por %p70, %p71
    %p73 = scmp.ne.s32.totalorder %s59, %s60
    %p74 = scmp.eq.s32.totalorder %s14, 1
    %p75 = por %p73, %p74
    %p77 = scmp.ne.s32.totalorder %s60, %s76
    %p78 = scmp.eq.s32.totalorder %s14, 0
    %p79 = por %p77, %p78
    %s80 = ssub.s32 %s15, %s27
    %s81 = ssub.s32 %s16, %s23
    %s82 = sor.u32 %s80, %s81
    %p83 = scmp.eq.s32.totalorder %s82, 0
    %s85 = sadd.s32 %s84, 1
    %s86 = scalar_select %p83, %s84, %s85
    %p89 = pneg %p83
    %p90 = scmp.eq.s32.totalorder %s8, 1
    %p91 = por %p89, %p90
    %p92 = scmp.ne.s32.totalorder %s84, %s87
    %p93 = scmp.eq.s32.totalorder %s8, 0
    %p94 = por %p92, %p93
    %p95 = scmp.ne.s32.totalorder %s84, %s87
    %p96 = scmp.eq.s32.totalorder %s13, 1
    %p97 = por %p95, %p96
    %p98 = scmp.ne.s32.totalorder %s87, %s88
    %p99 = scmp.eq.s32.totalorder %s13, 0
    %p100 = por %p98, %p99
    %p101 = scmp.ne.s32.totalorder %s87, %s88
    %p102 = scmp.eq.s32.totalorder %s14, 1
    %p103 = por %p101, %p102
    %p105 = scmp.ne.s32.totalorder %s88, %s104
    %p106 = scmp.eq.s32.totalorder %s14, 0
    %p107 = por %p105, %p106
    %p108 = scmp.le.s32.totalorder 1, %s8
    %p109 = scmp.lt.s32.totalorder %s8, 3
    %p110 = pnand %p108, %p109
    %p111 = pneg %p110
    // Predicated region
    $region9: #{tpu_custom_call.1} parent=5 // pred_check
      _
    $region10: #{tpu_custom_call.1} parent=5 // pred_check_branch
      %113 = sbr.rel (%p110) target = $region12
    $region11: #{tpu_custom_call.1} parent=5 // pred_region
      %s114 = ssub.s32 %s8, 1
      // Predicated region
      $region13: #{tpu_custom_call.1} parent=11 // pred_check
        %p115 = pneg %p72
      $region14: #{tpu_custom_call.1} parent=11 // pred_check_branch
        %117 = sbr.rel (%p115) target = $region16
      $region15: #{tpu_custom_call.1} parent=11 // pred_region
        %p118 = scmp.lt.s32.totalorder %s18, 0
        %s119 = scalar_select %p118, %s18, 0
        %s120 = smul.addr %s119, 8
        %s121 = scalar_lea.vmem %s1, %s120
      $region16: #{tpu_custom_call.1} parent=11 // pred_fallthru
        _
    $region12: #{tpu_custom_call.1} parent=5 // pred_fallthru
      _
    %p122 = scmp.lt.s32.totalorder %s8, 2
    // Predicated region
    $region17: #{tpu_custom_call.1} parent=5 // pred_check
      %p123 = pneg %p122
    $region18: #{tpu_custom_call.1} parent=5 // pred_check_branch
      %125 = sbr.rel (%p123) target = $region20
    $region19: #{tpu_custom_call.1} parent=5 // pred_region
      // Predicated region
      $region21: #{tpu_custom_call.1} parent=19 // pred_check
        %p126 = pneg %p40
      $region22: #{tpu_custom_call.1} parent=19 // pred_check_branch
        %128 = sbr.rel (%p126) target = $region24
      $region23: #{tpu_custom_call.1} parent=19 // pred_region
        %s129 = smul.u32 4, %s15
        %p130 = scmp.lt.s32.totalorder %s129, 7
        %s131 = scalar_select %p130, %s129, 7
        %s132 = smul.addr %s131, 8
        %s133 = scalar_lea.vmem %s0, %s132
        %s134 = smul.u32 4, %s15
      $region24: #{tpu_custom_call.1} parent=19 // pred_fallthru
        _
    $region20: #{tpu_custom_call.1} parent=5 // pred_fallthru
      _
    %p135 = scmp.le.s32.totalorder 1, %s8
    %p136 = scmp.lt.s32.totalorder %s8, 3
    %p137 = pnand %p135, %p136
    %p138 = pneg %p137
    // Predicated region
    $region25: #{tpu_custom_call.1} parent=5 // pred_check
      _
    $region26: #{tpu_custom_call.1} parent=5 // pred_check_branch
      %140 = sbr.rel (%p137) target = $region28
    $region27: #{tpu_custom_call.1} parent=5 // pred_region
      %s141 = ssub.s32 %s8, 1
      %s142 = smul.u32 4, %s17
      %p143 = scmp.lt.s32.totalorder %s142, 7
      %s144 = scalar_select %p143, %s142, 7
      %s145 = smul.addr %s144, 8
      %s146 = scalar_lea.vmem %s0, %s145
      %p147 = pneg %p46
      %p148 = pneg %p43
      %p149 = scmp.lt.s32.totalorder %s18, 0
      %s150 = scalar_select %p149, %s18, 0
      %s151 = smul.addr %s150, 8
      %s152 = scalar_lea.vmem %s1, %s151
      %p153 = pneg %p72
      %p154 = pneg %p69
      %p155 = pneg %p100
      %p156 = pneg %p97
      %s157 = smul.u32 4, %s17
      %p158 = scmp.lt.s32.totalorder %s157, 7
      %s159 = scalar_select %p158, %s157, 7
      %p160 = scmp.lt.s32.totalorder %s18, 0
      %s161 = scalar_select %p160, %s18, 0
      %s162 = sadd.s32 %s161, %s159
      %s163 = smul.addr %s162, 8
      %s164 = scalar_lea.vmem %s2, %s163
      %s165 = smul.u32 4, %s17
      %p166 = scmp.lt.s32.totalorder %s165, 7
      %s167 = scalar_select %p166, %s165, 7
      %s168 = smul.addr %s167, 8
      %s169 = scalar_lea.vmem %s0, %s168
      %s170 = smul.u32 4, %s17
      %p171 = scmp.lt.s32.totalorder %s18, 0
      %s172 = scalar_select %p171, %s18, 0
      %s173 = smul.addr %s172, 8
      %s174 = scalar_lea.vmem %s1, %s173
      %s175 = smul.u32 4, %s17
      %p176 = scmp.lt.s32.totalorder %s175, 7
      %s177 = scalar_select %p176, %s175, 7
      %p178 = scmp.lt.s32.totalorder %s18, 0
      %s179 = scalar_select %p178, %s18, 0
      %s180 = sadd.s32 %s179, %s177
      %s181 = smul.addr %s180, 8
      %s182 = scalar_lea.vmem %s2, %s181
      %s183 = smul.u32 4, %s17
      %v184 = vld [vmem:[%s169] sm:$0xff]
      %v185 = vld [vmem:[%s169 + $0x8] sm:$0xff]
      %v186 = vld [vmem:[%s169 + $0x10] sm:$0xff]
      %v187 = vld [vmem:[%s169 + $0x18] sm:$0xff]
      %v188 = vld [vmem:[%s174] sm:$0xff]
      %v189 = vld [vmem:[%s174 + $0x8] sm:$0xff]
      %v190 = vld [vmem:[%s174 + $0x10] sm:$0xff]
      %v191 = vld [vmem:[%s174 + $0x18] sm:$0xff]
      %vm192 = vcmask 261120
      %v194 = vsel %vm192, %v184, 0
      %v197 = vsel %vm192, %v185, 0
      %v200 = vsel %vm192, %v186, 0
      %v203 = vsel %vm192, %v187, 0
      %205 = vmatprep.subr.mxu0 0.0
      %206 = vmatpush1.msra.mxu0 0.0
      %207 = vmatprep.subr.mxu0 0.0
      %208 = vmatpush1.msra.mxu0 0.0
      %209 = vmatprep.subr.mxu0 0.0
      %210 = vmatpush1.msra.mxu0 0.0
      %211 = vmatprep.subr.mxu0 0.0
      %212 = vmatpush1.msra.mxu0 0.0
      %213 = vmatprep.subr.mxu0 0.0
      %214 = vmatpush1.msra.mxu0 0.0
      %215 = vmatprep.subr.mxu0 0.0
      %216 = vmatpush1.msra.mxu0 0.0
      %217 = vmatprep.subr.mxu0 0.0
      %218 = vmatpush1.msra.mxu0 0.0
      %219 = vmatprep.subr.mxu0 0.0
      %220 = vmatpush1.msra.mxu0 0.0
      %221 = vmatprep.subr.mxu0 0.0
      %222 = vmatpush1.msra.mxu0 0.0
      %223 = vmatprep.subr.mxu0 0.0
      %224 = vmatpush1.msra.mxu0 0.0
      %225 = vmatprep.subr.mxu0 0.0
      %226 = vmatpush1.msra.mxu0 0.0
      %227 = vmatprep.subr.mxu0 0.0
      %228 = vmatpush1.msra.mxu0 0.0
      %229 = vmatprep.subr.mxu0 0.0
      %230 = vmatpush1.msra.mxu0 %v191
      %231 = vmatprep.subr.mxu0 0.0
      %232 = vmatpush1.msra.mxu0 %v190
      %233 = vmatprep.subr.mxu0 0.0
      %234 = vmatpush1.msra.mxu0 %v189
      %235 = vmatprep.subr.mxu0 0.0
      %236 = vmatpush1.msra.mxu0 %v188
      %237 = vmatprep.subr.mxu0 0.0
      %238 = vmatpush2.msra.mxu0 0.0
      %239 = vmatprep.subr.mxu0 0.0
      %240 = vmatpush2.msra.mxu0 0.0
      %241 = vmatprep.subr.mxu0 0.0
      %242 = vmatpush2.msra.mxu0 0.0
      %243 = vmatprep.subr.mxu0 0.0
      %244 = vmatpush2.msra.mxu0 0.0
      %245 = vmatprep.subr.mxu0 0.0
      %246 = vmatpush2.msra.mxu0 0.0
      %247 = vmatprep.subr.mxu0 0.0
      %248 = vmatpush2.msra.mxu0 0.0
      %249 = vmatprep.subr.mxu0 0.0
      %250 = vmatpush2.msra.mxu0 0.0
      %251 = vmatprep.subr.mxu0 0.0
      %252 = vmatpush2.msra.mxu0 0.0
      %253 = vmatprep.subr.mxu0 0.0
      %254 = vmatpush2.msra.mxu0 0.0
      %255 = vmatprep.subr.mxu0 0.0
      %256 = vmatpush2.msra.mxu0 0.0
      %257 = vmatprep.subr.mxu0 0.0
      %258 = vmatpush2.msra.mxu0 0.0
      %259 = vmatprep.subr.mxu0 0.0
      %260 = vmatpush2.msra.mxu0 0.0
      %261 = vmatprep.subr.mxu0 0.0
      %262 = vmatpush2.msra.mxu0 0.0
      %263 = vmatprep.subr.mxu0 0.0
      %264 = vmatpush2.msra.mxu0 0.0
      %265 = vmatprep.subr.mxu0 0.0
      %266 = vmatpush2.msra.mxu0 0.0
      %267 = vmatprep.subr.mxu0 0.0
      %268 = vmatpush2.msra.mxu0 0.0
      %269 = vmatprep.mubr.f32.mxu0 0.0
      %270 = vmatmul.mubr.f32.gmra.mxu0 %v194
      %v271 = vpop.f32.mrf.mxu0
      %v272 = vadd.f32 0.0, %v271
      %v273 = vpop.f32.mrf.mxu0
      %274 = vmatprep.mubr.f32.mxu0 0.0
      %275 = vmatmul.mubr.f32.gmra.mxu0 %v197
      %v276 = vpop.f32.mrf.mxu0
      %v277 = vadd.f32 0.0, %v276
      %v278 = vpop.f32.mrf.mxu0
      %279 = vmatprep.mubr.f32.mxu0 0.0
      %280 = vmatmul.mubr.f32.gmra.mxu0 %v200
      %v281 = vpop.f32.mrf.mxu0
      %v282 = vadd.f32 0.0, %v281
      %v283 = vpop.f32.mrf.mxu0
      %284 = vmatprep.mubr.f32.mxu0 0.0
      %285 = vmatmul.mubr.f32.gmra.mxu0 %v203
      %v286 = vpop.f32.mrf.mxu0
      %v287 = vadd.f32 0.0, %v286
      %v288 = vpop.f32.mrf.mxu0
      %289 = vdwg.mxu0
      %vm290 = vcmask 121856
      %291 = vst.msk [vmem:[%s182] sm:$0xff] %vm290, %v272
      %292 = vst.msk [vmem:[%s182 + $0x8] sm:$0xff] %vm290, %v277
      %293 = vst.msk [vmem:[%s182 + $0x10] sm:$0xff] %vm290, %v282
      %294 = vst.msk [vmem:[%s182 + $0x18] sm:$0xff] %vm290, %v287
      %s295 = smul.u32 4, %s17
      %p296 = scmp.lt.s32.totalorder %s295, 7
      %s297 = scalar_select %p296, %s295, 7
      %p298 = scmp.lt.s32.totalorder %s18, 0
      %s299 = scalar_select %p298, %s18, 0
      %s300 = sadd.s32 %s299, %s297
      %s301 = smul.addr %s300, 8
      %s302 = scalar_lea.vmem %s2, %s301
      // Predicated region
      $region29: #{tpu_custom_call.1} parent=27 // pred_check
        %p303 = pneg %p97
      $region30: #{tpu_custom_call.1} parent=27 // pred_check_branch
        %305 = sbr.rel (%p303) target = $region32
      $region31: #{tpu_custom_call.1} parent=27 // pred_region
        %s306 = smul.u32 4, %s17
      $region32: #{tpu_custom_call.1} parent=27 // pred_fallthru
        _
    $region28: #{tpu_custom_call.1} parent=5 // pred_fallthru
      _
    %p307 = scmp.le.s32.totalorder 2, %s8
    // Predicated region
    $region33: #{tpu_custom_call.1} parent=5 // pred_check
      %p308 = pneg %p307
    $region34: #{tpu_custom_call.1} parent=5 // pred_check_branch
      %310 = sbr.rel (%p308) target = $region36
    $region35: #{tpu_custom_call.1} parent=5 // pred_region
      %s311 = ssub.s32 %s8, 2
      // Predicated region
      $region37: #{tpu_custom_call.1} parent=35 // pred_check
        %p312 = pneg %p103
      $region38: #{tpu_custom_call.1} parent=35 // pred_check_branch
        %314 = sbr.rel (%p312) target = $region40
      $region39: #{tpu_custom_call.1} parent=35 // pred_region
        %s315 = smul.u32 4, %s19
        %p316 = scmp.lt.s32.totalorder %s315, 7
        %s317 = scalar_select %p316, %s315, 7
        %p318 = scmp.lt.s32.totalorder %s20, 0
        %s319 = scalar_select %p318, %s20, 0
        %s320 = sadd.s32 %s319, %s317
        %s321 = smul.addr %s320, 8
        %s322 = scalar_lea.vmem %s2, %s321
      $region40: #{tpu_custom_call.1} parent=35 // pred_fallthru
        _
    $region36: #{tpu_custom_call.1} parent=5 // pred_fallthru
      _
  $region6: #{tpu_custom_call.1} parent=0 // loop_footer
    %s12 = sadd.s32 1, %s8
  $region7: #{tpu_custom_call.1} parent=0 // loop_footer_branch
    %7 = sbr.rel target = $region3
  $region8: #{tpu_custom_call.1} parent=0 // loop_exit
    _

</llo_original>
